<compile_context>
chip_gen: v6e
topology: v6e:2x2x1
jax: 0.10.0
libtpu: 0.0.40
codegen_flags: <defaults>
</compile_context>

<pallas_src>
import jax
import jax.numpy as jnp
from jax.experimental import pallas as pl
from jax.experimental.pallas import tpu as pltpu


def linear_kernel(x_ref, w_ref, b_ref, o_ref):
    # x_ref: (tb, D) VMEM tile (pipelined over the batch)
    # w_ref: (1, D)  VMEM, same block every step -> resident
    # b_ref: (1, 1)  f32 SMEM scalar
    # o_ref: (tb, 1) f32 VMEM output tile
    D = x_ref.shape[1]

    if D % 128 == 0 and D > 128:
        # Two-stage reduction: VPU multiply-adds over vreg-aligned 128-lane chunks,
        # then a single cross-lane reduce per 8 output rows (one per result vreg).
        nchunks = D // 128
        acc = (x_ref[:, 0:128].astype(jnp.float32)
               * w_ref[:, 0:128].astype(jnp.float32))
        for k in range(1, nchunks):          # static unroll; slices are vreg-aligned
            lo = k * 128
            acc = acc + (x_ref[:, lo:lo + 128].astype(jnp.float32)
                         * w_ref[:, lo:lo + 128].astype(jnp.float32))
        row = jnp.sum(acc, axis=-1, keepdims=True)      # 1 XLU reduce / 8 rows
    else:
        # Small / irregular D: direct reduce is cheap and stays off the roofline.
        prod = x_ref[...].astype(jnp.float32) * w_ref[...].astype(jnp.float32)
        row = jnp.sum(prod, axis=-1, keepdims=True)

    o_ref[...] = (row + b_ref[0, 0]).astype(o_ref.dtype)


def _round_up(n: int, m: int) -> int:
    return ((n + m - 1) // m) * m


def _pick_tb(B: int, D: int, itemsize: int) -> int:
    # ~12 MiB per x buffer: amortizes the ~0.35us per-grid-step overhead on every
    # generation while the double-buffered pair (+weight/output/scratch) stays well
    # under v7x's 64 MiB physical VMEM. v5e/v6e just need the explicit
    # vmem_limit_bytes bump (their physical VMEM is 128 MiB).
    per_buffer = 12 * 1024 * 1024
    row_bytes = max(D * itemsize, 1)
    tb = max(8, (per_buffer // row_bytes) // 8 * 8)
    # v7x megacore: keep >= 4 batch tiles when the batch is big enough so the
    # "parallel" grid axis can actually be split across both TensorCores.
    if B >= 32:
        tb = min(tb, _round_up(pl.cdiv(B, 4), 8))
    # Never exceed the (sublane-padded) batch.
    tb = min(tb, _round_up(B, 8))
    return max(8, tb)


def simple_model_forward(x, weight, bias, *, tb=None):
    """x: (B, D), weight: (1, D) [native PyTorch layout], bias: (1,) -> (B, 1)."""
    B, D = x.shape
    itemsize = jnp.dtype(x.dtype).itemsize

    if tb is None:
        tb = _pick_tb(B, D, itemsize)
    tb = max(8, (int(tb) // 8) * 8)

    grid = (pl.cdiv(B, tb),)

    # Explicit VMEM budget from the chosen tile: x double-buffer + weight
    # (conservatively counted double-buffered) + output double-buffer, with 2x
    # margin for compiler-internal scratch. Clamp to [16 MiB, 48 MiB]: raises
    # v5e's 16 MiB default when needed, stays under v7x's 64 MiB physical.
    need = 2 * tb * D * itemsize + 2 * D * itemsize + 2 * tb * 4
    vmem_limit = int(min(max(2 * need, 16 << 20), 48 << 20))

    b2 = bias.reshape(1, 1).astype(jnp.float32)  # scalar bias -> SMEM

    cost = pl.CostEstimate(
        flops=2 * B * D,
        transcendentals=0,
        bytes_accessed=B * D * itemsize + D * itemsize + B * 4 + 4,
    )

    return pl.pallas_call(
        linear_kernel,
        out_shape=jax.ShapeDtypeStruct((B, 1), jnp.float32),
        grid_spec=pltpu.PrefetchScalarGridSpec(
            num_scalar_prefetch=0,
            grid=grid,
            in_specs=[
                # x: tiled over batch; Pallas double-buffers the DMA for overlap.
                pl.BlockSpec((tb, D), lambda i: (i, 0)),
                # weight: native (1, D), same block each step -> stays in VMEM.
                pl.BlockSpec((1, D), lambda i: (0, 0)),
                # bias: scalar in SMEM (no padded VMEM tile, read as b_ref[0, 0]).
                pl.BlockSpec(memory_space=pltpu.MemorySpace.SMEM),
            ],
            out_specs=pl.BlockSpec((tb, 1), lambda i: (i, 0)),
        ),
        compiler_params=pltpu.CompilerParams(
            # Batch tiles are independent -> shard across TensorCores on v7x;
            # harmless on single-TC v5e/v6e.
            dimension_semantics=("parallel",),
            vmem_limit_bytes=vmem_limit,
        ),
        cost_estimate=cost,
    )(x, weight, b2)


if __name__ == "__main__":
    key = jax.random.PRNGKey(0)
    k_x, k_w, k_b, k_x2 = jax.random.split(key, 4)

    # --- Case 1: D a multiple of 128 -> exercises the two-stage reduce path. ---
    batch, input_dim = 8, 256
    x = jax.random.normal(k_x, (batch, input_dim), dtype=jnp.float32)

    # Deterministic parameter init mimicking nn.Linear's uniform(-1/sqrt(D), 1/sqrt(D)).
    bound = 1.0 / (input_dim ** 0.5)
    weight = jax.random.uniform(k_w, (1, input_dim), minval=-bound, maxval=bound,
                                dtype=jnp.float32)
    bias = jax.random.uniform(k_b, (1,), minval=-bound, maxval=bound,
                              dtype=jnp.float32)

    out = jax.block_until_ready(simple_model_forward(x, weight, bias))
    ref = x @ weight.T + bias
    assert out.shape == (batch, 1)
    assert jnp.allclose(out, ref, atol=1e-5, rtol=1e-4)

    # --- Case 2: small D (< 128) -> exercises the direct-reduce fallback path. ---
    batch2, input_dim2 = 16, 32
    x2 = jax.random.normal(k_x2, (batch2, input_dim2), dtype=jnp.float32)
    w2 = weight[:, :input_dim2]

    out2 = jax.block_until_ready(simple_model_forward(x2, w2, bias))
    ref2 = x2 @ w2.T + bias
    assert out2.shape == (batch2, 1)
    assert jnp.allclose(out2, ref2, atol=1e-5, rtol=1e-4)

    print("KERNEL_OK")
</pallas_src>

<mosaic_0001>
module attributes {stable_mosaic.version = 11 : i64} {
  func.func @linear_kernel(%arg0: i32, %arg1: memref<8x256xf32, #tpu.memory_space<vmem>>, %arg2: memref<1x256xf32, #tpu.memory_space<vmem>>, %arg3: memref<1x1xf32, #tpu.memory_space<smem>>, %arg4: memref<8x1xf32, #tpu.memory_space<vmem>>) attributes {dimension_semantics = [#tpu.dimension_semantics<parallel>], iteration_bounds = array<i64: 1>, scalar_prefetch = 0 : i64, scratch_operands = 0 : i64, tpu.core_type = #tpu.core_type<tc>, window_params = [{transform_indices = @transform_0, window_bounds = array<i64: 8, 256>}, {pipeline_mode = #tpu.pipeline_mode<synchronous>, transform_indices = @transform_1, window_bounds = array<i64: 1, 256>}, {transform_indices = @transform_2, window_bounds = array<i64: 1, 1>}, {transform_indices = @transform_3, window_bounds = array<i64: 8, 1>}]} {
    %c0 = arith.constant 0 : index
    %c0_0 = arith.constant 0 : index
    %0 = vector.load %arg1[%c0, %c0_0] : memref<8x256xf32, #tpu.memory_space<vmem>>, vector<8x128xf32>
    %c0_1 = arith.constant 0 : index
    %c0_2 = arith.constant 0 : index
    %1 = vector.load %arg2[%c0_1, %c0_2] : memref<1x256xf32, #tpu.memory_space<vmem>>, vector<1x128xf32>
    %2 = vector.broadcast %1 : vector<1x128xf32> to vector<8x128xf32>
    %3 = arith.mulf %0, %2 : vector<8x128xf32>
    %c0_3 = arith.constant 0 : index
    %c128 = arith.constant 128 : index
    %4 = vector.load %arg1[%c0_3, %c128] : memref<8x256xf32, #tpu.memory_space<vmem>>, vector<8x128xf32>
    %c0_4 = arith.constant 0 : index
    %c128_5 = arith.constant 128 : index
    %5 = vector.load %arg2[%c0_4, %c128_5] : memref<1x256xf32, #tpu.memory_space<vmem>>, vector<1x128xf32>
    %6 = vector.broadcast %5 : vector<1x128xf32> to vector<8x128xf32>
    %7 = arith.mulf %4, %6 : vector<8x128xf32>
    %8 = arith.addf %3, %7 : vector<8x128xf32>
    %cst = arith.constant dense<0.000000e+00> : vector<8xf32>
    %9 = vector.multi_reduction <add>, %8, %cst [1] : vector<8x128xf32> to vector<8xf32>
    %10 = vector.shape_cast %9 : vector<8xf32> to vector<8x1xf32>
    %c0_6 = arith.constant 0 : index
    %c0_7 = arith.constant 0 : index
    %11 = memref.load %arg3[%c0_6, %c0_7] : memref<1x1xf32, #tpu.memory_space<smem>>
    %12 = vector.broadcast %11 : f32 to vector<8x1xf32>
    %13 = arith.addf %10, %12 : vector<8x1xf32>
    %c0_8 = arith.constant 0 : index
    %c0_9 = arith.constant 0 : index
    %14 = vector.load %arg4[%c0_8, %c0_9] : memref<8x1xf32, #tpu.memory_space<vmem>>, vector<8x1xf32>
    tpu.vector_store %arg4[%c0_8, %c0_9], %13 {strides = array<i32>} : memref<8x1xf32, #tpu.memory_space<vmem>>, vector<8x1xf32>,
    return
  }
  func.func @transform_0(%arg0: i32) -> (i32, i32) {
    %c0_i32 = arith.constant 0 : i32
    %c0_i32_0 = arith.constant 0 : i32
    return %arg0, %c0_i32 : i32, i32
  }
  func.func @transform_1(%arg0: i32) -> (i32, i32) {
    %c0_i32 = arith.constant 0 : i32
    %c0_i32_0 = arith.constant 0 : i32
    %c0_i32_1 = arith.constant 0 : i32
    return %c0_i32, %c0_i32_0 : i32, i32
  }
  func.func @transform_2(%arg0: i32) -> (i32, i32) {
    %c0_i32 = arith.constant 0 : i32
    %c0_i32_0 = arith.constant 0 : i32
    %c0_i32_1 = arith.constant 0 : i32
    return %c0_i32, %c0_i32_0 : i32, i32
  }
  func.func @transform_3(%arg0: i32) -> (i32, i32) {
    %c0_i32 = arith.constant 0 : i32
    %c0_i32_0 = arith.constant 0 : i32
    return %arg0, %c0_i32 : i32, i32
  }
}

</mosaic_0001>

<llo_original>
// kernel: tpu_custom_call.1
$region0: #{tpu_custom_call.1}
  #allocation0 [shape = 'u32[]', space=smem, size = 0x4, offset = 0x4, fixed_abs, tag = 'smem constant byte address 0x4 - core index']
  #allocation1 [shape = 'u32[144,128]{1,0:T(1,128)}', space=vmem, size = 0x12000, scoped, tag = 'internal scratch']
  #allocation2 [shape = 'f32[1,1]{1,0:T(1,128)S(6)}', space=smem, size = 0x200, scoped, tag = 'scoped memory for tpu_custom_call.1']
  %s0 = inlined_call_operand.hbm [shape: f32[8,256], index: 0, kind: input, shape index: {}]
  %s1 = inlined_call_operand.vmem [shape: f32[1,256], index: 1, kind: input, shape index: {}]
  %s2 = inlined_call_operand.<no memory space> [shape: f32[1,1], index: 2, kind: input, shape index: {}]
  %s3 = inlined_call_operand.vmem [shape: f32[8,1], index: 3, kind: output, shape index: {}]
  %s4 = sld [smem:[#allocation0]]
  $region26: #{tpu_custom_call.1} parent=0
    _
  %s6 = ssub.s32 1, %s4
  %s7 = scalar_select 0, %s6, %s4
  %8 = sst [smem:[#allocation2]] %s2
  $region1: #{tpu_custom_call.1} parent=0
    #allocation3 [shape = 'u8[8192]{0}', space=vmem, size = 0x2000, scoped, tag = 'input window, operand 0, single buffered']
    #allocation4 [shape = 's32[1]{0}', space=sflag, size = 0x4, scoped, tag = 'scoped memory for tpu_custom_call.1']
    %9 = vsyncpa [#allocation4], 0
    // Predicated region
    $region2: #{tpu_custom_call.1} parent=1 // pred_check
      _
    $region3: #{tpu_custom_call.1} parent=1 // pred_check_branch
      %11 = sbr.rel (0) target = $region5
    $region4: #{tpu_custom_call.1} parent=1 // pred_region
      %s13 = ssub.s32 256, 256
      %14 = vsyncadd [#allocation4], %s13
      %s16 = sshll.u32 [#allocation3], 4
      %s17 = int_to_ptr.vmem [resolvable:$true] %s16
      %19 = dma.hbm_to_vmem [thread:$0]  %s0, 256, %s17, [#allocation4]
    $region5: #{tpu_custom_call.1} parent=1 // pred_fallthru
      _
    // Predicated region
    $region6: #{tpu_custom_call.1} parent=1 // pred_check
      _
    $region7: #{tpu_custom_call.1} parent=1 // pred_check_branch
      %21 = sbr.rel (0) target = $region9
    $region8: #{tpu_custom_call.1} parent=1 // pred_region
      _
    $region9: #{tpu_custom_call.1} parent=1 // pred_fallthru
      _
    // Predicated region
    $region10: #{tpu_custom_call.1} parent=1 // pred_check
      _
    $region11: #{tpu_custom_call.1} parent=1 // pred_check_branch
      %23 = sbr.rel (0) target = $region13
    $region12: #{tpu_custom_call.1} parent=1 // pred_region
      _
    $region13: #{tpu_custom_call.1} parent=1 // pred_fallthru
      _
    // Predicated region
    $region14: #{tpu_custom_call.1} parent=1 // pred_check
      _
    $region15: #{tpu_custom_call.1} parent=1 // pred_check_branch
      %25 = sbr.rel (0) target = $region17
    $region16: #{tpu_custom_call.1} parent=1 // pred_region
      %26 = dma.done [#allocation4], 256
    $region17: #{tpu_custom_call.1} parent=1 // pred_fallthru
      _
    %v27 = vld [vmem:[#allocation3] sm:$0xff]
    %v28 = vld [vmem:[%s1] sm:$0x1]
    %v30 = vlaneseq
    %v31 = vshrl.u32 %v30, 7
    %v32 = vsub.s32 0, %v31
    %v33 = vrot.slane %v28, %v32
    %v35 = vmul.f32 %v27, %v33
    %v36 = vld [vmem:[#allocation3 + $0x8] sm:$0xff]
    %v37 = vld [vmem:[%s1 + $0x1] sm:$0x1]
    %v39 = vlaneseq
    %v40 = vshrl.u32 %v39, 7
    %v41 = vsub.s32 0, %v40
    %v42 = vrot.slane %v37, %v41
    %v44 = vmul.f32 %v36, %v42
    %v45 = vadd.f32 %v35, %v44
    %46 = vadd.xlane.f32.xlu0 %v45
    %v47 = vpop.xlane.xlu0 %46
    %s48 = sld [smem:[#allocation2]]
    %v49 = vstv %s48
    %v50 = vadd.f32 %v47, %v49
    %vm51 = vcmask 7168
    %52 = vst.msk [vmem:[%s3] sm:$0xff] %vm51, %v50
    // Predicated region
    $region18: #{tpu_custom_call.1} parent=1 // pred_check
      _
    $region19: #{tpu_custom_call.1} parent=1 // pred_check_branch
      %54 = sbr.rel (0) target = $region21
    $region20: #{tpu_custom_call.1} parent=1 // pred_region
      _
    $region21: #{tpu_custom_call.1} parent=1 // pred_fallthru
      _
    // Predicated region
    $region22: #{tpu_custom_call.1} parent=1 // pred_check
      _
    $region23: #{tpu_custom_call.1} parent=1 // pred_check_branch
      %56 = sbr.rel (0) target = $region25
    $region24: #{tpu_custom_call.1} parent=1 // pred_region
      _
    $region25: #{tpu_custom_call.1} parent=1 // pred_fallthru
      _
    %57 = vsyncpa [#allocation4], 1

</llo_original>
